<compile_context>
chip_gen: v7x
topology: tpu7x:2x2x1
jax: 0.10.0
libtpu: 0.0.40
codegen_flags: <defaults>
</compile_context>

<pallas_src>
import jax
import jax.numpy as jnp
from jax.experimental import pallas as pl
from jax.experimental.pallas import tpu as pltpu

HEADS = 2  # the module hard-codes h = 2 in forward()


def _make_attention_kernel(b, n, dim, matmul_dtype):
    d = dim // HEADS

    def kernel(x_ref, w_ref, o_ref):
        # x_ref: (b*n, dim)   w_ref: (dim, 3*dim)   o_ref: (b*n, dim)
        x2d = x_ref[...].astype(matmul_dtype)
        w = w_ref[...].astype(matmul_dtype)

        # Single fused QKV projection (scale already folded into the Q columns).
        qkv = jnp.dot(x2d, w, preferred_element_type=jnp.float32)  # (b*n, 3*dim) f32

        def heads_to_batch(col0):
            # Take a (b*n, dim) column block at offset `col0` and restack it as
            # (HEADS*b, n, d), head-major.  The (b*n, d) -> (b, n, d) reshape is
            # sublane-tile aligned (n == 8) and the axis-0 concat is cheap.
            parts = [
                qkv[:, col0 + h * d:col0 + (h + 1) * d].reshape(b, n, d)
                for h in range(HEADS)
            ]
            return jnp.concatenate(parts, axis=0)

        q = heads_to_batch(0)          # (HEADS*b, n, d), scale pre-folded
        k = heads_to_batch(dim)
        v = heads_to_batch(2 * dim)

        # One batched scores matmul over all (head, batch) pairs; K^T absorbed.
        dots = jnp.einsum(
            'bqd,bkd->bqk',
            q.astype(matmul_dtype), k.astype(matmul_dtype),
            preferred_element_type=jnp.float32)                    # (HEADS*b, n, n)

        # Softmax in f32 (exact).
        dots = dots - jnp.max(dots, axis=-1, keepdims=True)
        p = jnp.exp(dots)
        attn = p / jnp.sum(p, axis=-1, keepdims=True)

        # One batched attn @ v matmul.
        out = jnp.einsum(
            'bqk,bkd->bqd',
            attn.astype(matmul_dtype), v.astype(matmul_dtype),
            preferred_element_type=jnp.float32)                    # (HEADS*b, n, d)

        # Merge heads back into the lane dim: (HEADS*b, n, d) -> (b, n, HEADS*d).
        merged = jnp.concatenate(
            [out[h * b:(h + 1) * b] for h in range(HEADS)], axis=-1)
        o_ref[...] = merged.reshape(b * n, dim).astype(o_ref.dtype)

    return kernel


def prepare_qkv_weight(w_qkv):
    """One-time host/init-side prep: transpose the PyTorch (3*dim, dim) weight to
    (dim, 3*dim) so the kernel computes x @ W, and fold the dim**-0.5 softmax
    scale into the Q columns.  Keeps a single contiguous fused buffer."""
    three_dim, dim = w_qkv.shape
    assert three_dim == 3 * dim and dim % HEADS == 0
    scale = dim ** (-0.5)            # module scales by full dim ** -0.5 (intentional)
    w_t = w_qkv.T                    # (dim, 3*dim): x @ w_t == Linear(x)
    return jnp.concatenate([w_t[:, :dim] * scale, w_t[:, dim:]], axis=1)


def attention_pallas(x, w_fused, *, matmul_dtype=jnp.bfloat16):
    """x: (b, n, dim) f32; w_fused: (dim, 3*dim) pre-processed fused QKV weight."""
    b, n, dim = x.shape
    x2d = x.reshape(b * n, dim)      # free reshape at the JAX boundary
    kernel = _make_attention_kernel(b, n, dim, matmul_dtype)

    out2d = pl.pallas_call(
        kernel,
        out_shape=jax.ShapeDtypeStruct((b * n, dim), x.dtype),
        in_specs=[
            pl.BlockSpec(memory_space=pltpu.MemorySpace.VMEM),
            pl.BlockSpec(memory_space=pltpu.MemorySpace.VMEM),
        ],
        out_specs=pl.BlockSpec(memory_space=pltpu.MemorySpace.VMEM),
    )(x2d, w_fused)

    return out2d.reshape(b, n, dim)  # free reshape back


def attention_ref(x, w_qkv):
    """Pure-JAX reference matching the PyTorch forward."""
    b, n, dim = x.shape
    d = dim // HEADS
    scale = dim ** (-0.5)
    qkv = x @ w_qkv.T                                   # (b, n, 3*dim)
    q, k, v = jnp.split(qkv, 3, axis=-1)                # each (b, n, dim)

    def split_heads(t):
        return t.reshape(b, n, HEADS, d).transpose(0, 2, 1, 3)  # (b, h, n, d)

    q, k, v = map(split_heads, (q, k, v))
    dots = jnp.einsum("bhid,bhjd->bhij", q, k) * scale
    attn = jax.nn.softmax(dots, axis=-1)
    out = jnp.einsum("bhij,bhjd->bhid", attn, v)
    return out.transpose(0, 2, 1, 3).reshape(b, n, dim)


if __name__ == "__main__":
    key = jax.random.PRNGKey(0)
    b, n, dim = 2, 8, 32
    kx, kw = jax.random.split(key)

    x = jax.random.normal(kx, (b, n, dim), dtype=jnp.float32)
    # deterministic init of nn.Linear(dim, 3*dim, bias=False).weight -> (3*dim, dim)
    bound = dim ** (-0.5)
    w_qkv = jax.random.uniform(kw, (3 * dim, dim), dtype=jnp.float32,
                               minval=-bound, maxval=bound)

    # One-time weight prep (done at "init", not per forward call).
    w_fused = jax.block_until_ready(prepare_qkv_weight(w_qkv))

    # bf16 MXU operands (per review, native on v5e/v6e/v7x); softmax stays f32.
    out = attention_pallas(x, w_fused, matmul_dtype=jnp.bfloat16)
    out = jax.block_until_ready(out)

    ref = attention_ref(x, w_qkv)
    assert out.shape == (b, n, dim)
    # tolerance accounts for bf16 matmul operands (accumulation is still f32)
    assert jnp.allclose(out, ref, atol=2e-2, rtol=2e-2), "mismatch vs pure-JAX reference"

    print("KERNEL_OK")
</pallas_src>

<mosaic_0001>
module attributes {stable_mosaic.version = 11 : i64} {
  func.func @kernel(%arg0: memref<16x32xf32, #tpu.memory_space<vmem>>, %arg1: memref<32x96xf32, #tpu.memory_space<vmem>>, %arg2: memref<16x32xf32, #tpu.memory_space<vmem>>) attributes {dimension_semantics = [], scalar_prefetch = 0 : i64, scratch_operands = 0 : i64, tpu.core_type = #tpu.core_type<tc>} {
    %c0 = arith.constant 0 : index
    %c0_0 = arith.constant 0 : index
    %0 = vector.load %arg0[%c0, %c0_0] : memref<16x32xf32, #tpu.memory_space<vmem>>, vector<16x32xf32>
    %1 = arith.truncf %0 : vector<16x32xf32> to vector<16x32xbf16>
    %c0_1 = arith.constant 0 : index
    %c0_2 = arith.constant 0 : index
    %2 = vector.load %arg1[%c0_1, %c0_2] : memref<32x96xf32, #tpu.memory_space<vmem>>, vector<32x96xf32>
    %3 = arith.truncf %2 : vector<32x96xf32> to vector<32x96xbf16>
    %cst = arith.constant dense<0.000000e+00> : vector<16x96xf32>
    %4 = tpu.matmul %1, %3, %cst {dimension_numbers = #tpu.dot_dimension_numbers<[1], [0], [0], [1], [0, 0, 1, 1], [], []>} : vector<16x32xbf16>, vector<32x96xbf16>, vector<16x96xf32> -> vector<16x96xf32>
    %5 = vector.extract_strided_slice %4 {offsets = [0, 0], sizes = [16, 16], strides = [1, 1]} : vector<16x96xf32> to vector<16x16xf32>
    %6 = vector.shape_cast %5 : vector<16x16xf32> to vector<2x8x16xf32>
    %7 = vector.extract_strided_slice %4 {offsets = [0, 16], sizes = [16, 16], strides = [1, 1]} : vector<16x96xf32> to vector<16x16xf32>
    %8 = vector.shape_cast %7 : vector<16x16xf32> to vector<2x8x16xf32>
    %9 = tpu.concatenate %6, %8 in 0 : vector<2x8x16xf32>, vector<2x8x16xf32> -> vector<4x8x16xf32>
    %10 = vector.extract_strided_slice %4 {offsets = [0, 32], sizes = [16, 16], strides = [1, 1]} : vector<16x96xf32> to vector<16x16xf32>
    %11 = vector.shape_cast %10 : vector<16x16xf32> to vector<2x8x16xf32>
    %12 = vector.extract_strided_slice %4 {offsets = [0, 48], sizes = [16, 16], strides = [1, 1]} : vector<16x96xf32> to vector<16x16xf32>
    %13 = vector.shape_cast %12 : vector<16x16xf32> to vector<2x8x16xf32>
    %14 = tpu.concatenate %11, %13 in 0 : vector<2x8x16xf32>, vector<2x8x16xf32> -> vector<4x8x16xf32>
    %15 = vector.extract_strided_slice %4 {offsets = [0, 64], sizes = [16, 16], strides = [1, 1]} : vector<16x96xf32> to vector<16x16xf32>
    %16 = vector.shape_cast %15 : vector<16x16xf32> to vector<2x8x16xf32>
    %17 = vector.extract_strided_slice %4 {offsets = [0, 80], sizes = [16, 16], strides = [1, 1]} : vector<16x96xf32> to vector<16x16xf32>
    %18 = vector.shape_cast %17 : vector<16x16xf32> to vector<2x8x16xf32>
    %19 = tpu.concatenate %16, %18 in 0 : vector<2x8x16xf32>, vector<2x8x16xf32> -> vector<4x8x16xf32>
    %20 = arith.truncf %9 : vector<4x8x16xf32> to vector<4x8x16xbf16>
    %21 = arith.truncf %14 : vector<4x8x16xf32> to vector<4x8x16xbf16>
    "tpu.trace_start"() <{level = 10 : i32, message = "bqd,bkd->bqk"}> : () -> ()
    %cst_3 = arith.constant dense<0.000000e+00> : vector<4x8x8xf32>
    %22 = tpu.matmul %20, %21, %cst_3 {dimension_numbers = #tpu.dot_dimension_numbers<[2], [2], [1], [1], [0, 0, 0, 1, 1, 1], [0], [0]>} : vector<4x8x16xbf16>, vector<4x8x16xbf16>, vector<4x8x8xf32> -> vector<4x8x8xf32>
    "tpu.trace_stop"() : () -> ()
    %cst_4 = arith.constant dense<0xFF800000> : vector<4x8xf32>
    %23 = vector.multi_reduction <maximumf>, %22, %cst_4 [2] : vector<4x8x8xf32> to vector<4x8xf32>
    %24 = vector.shape_cast %23 : vector<4x8xf32> to vector<4x8x1xf32>
    %25 = vector.broadcast %24 : vector<4x8x1xf32> to vector<4x8x8xf32>
    %26 = arith.subf %22, %25 : vector<4x8x8xf32>
    %27 = math.exp %26 : vector<4x8x8xf32>
    %cst_5 = arith.constant dense<0.000000e+00> : vector<4x8xf32>
    %28 = vector.multi_reduction <add>, %27, %cst_5 [2] : vector<4x8x8xf32> to vector<4x8xf32>
    %29 = vector.shape_cast %28 : vector<4x8xf32> to vector<4x8x1xf32>
    %30 = vector.broadcast %29 : vector<4x8x1xf32> to vector<4x8x8xf32>
    %31 = arith.divf %27, %30 : vector<4x8x8xf32>
    %32 = arith.truncf %31 : vector<4x8x8xf32> to vector<4x8x8xbf16>
    %33 = arith.truncf %19 : vector<4x8x16xf32> to vector<4x8x16xbf16>
    "tpu.trace_start"() <{level = 10 : i32, message = "bqk,bkd->bqd"}> : () -> ()
    %cst_6 = arith.constant dense<0.000000e+00> : vector<4x8x16xf32>
    %34 = tpu.matmul %32, %33, %cst_6 {dimension_numbers = #tpu.dot_dimension_numbers<[2], [1], [1], [2], [0, 0, 0, 1, 1, 2], [0], [0]>} : vector<4x8x8xbf16>, vector<4x8x16xbf16>, vector<4x8x16xf32> -> vector<4x8x16xf32>
    "tpu.trace_stop"() : () -> ()
    %35 = vector.extract_strided_slice %34 {offsets = [0, 0, 0], sizes = [2, 8, 16], strides = [1, 1, 1]} : vector<4x8x16xf32> to vector<2x8x16xf32>
    %36 = vector.extract_strided_slice %34 {offsets = [2, 0, 0], sizes = [2, 8, 16], strides = [1, 1, 1]} : vector<4x8x16xf32> to vector<2x8x16xf32>
    %37 = tpu.concatenate %35, %36 in 2 : vector<2x8x16xf32>, vector<2x8x16xf32> -> vector<2x8x32xf32>
    %38 = vector.shape_cast %37 : vector<2x8x32xf32> to vector<16x32xf32>
    %c0_7 = arith.constant 0 : index
    %c0_8 = arith.constant 0 : index
    %39 = vector.load %arg2[%c0_7, %c0_8] : memref<16x32xf32, #tpu.memory_space<vmem>>, vector<16x32xf32>
    tpu.vector_store %arg2[%c0_7, %c0_8], %38 {strides = array<i32>} : memref<16x32xf32, #tpu.memory_space<vmem>>, vector<16x32xf32>,
    return
  }
}

</mosaic_0001>

<llo_original>
// kernel: tpu_custom_call.1
$region0: #{tpu_custom_call.1}
  #allocation0 [shape = 'u32[]', space=smem, size = 0x4, offset = 0x4, fixed_abs, tag = 'smem constant byte address 0x4 - core index']
  #allocation1 [shape = 'u32[144,128]{1,0:T(1,128)}', space=vmem, size = 0x12000, scoped, tag = 'internal scratch']
  %s0 = inlined_call_operand.hbm [shape: f32[16,32], index: 0, kind: input, shape index: {}]
  %s1 = inlined_call_operand.hbm [shape: f32[32,96], index: 1, kind: input, shape index: {}]
  %s2 = inlined_call_operand.hbm [shape: f32[16,32], index: 2, kind: output, shape index: {}]
  %s3 = sld [smem:[#allocation0]]
  $region26: #{tpu_custom_call.1} parent=0
    _
  %s5 = ssub.s32 1, %s3
  %s6 = scalar_select 0, %s5, %s3
  $region1: #{tpu_custom_call.1} parent=0
    #allocation2 [shape = 'u8[8192]{0}', space=vmem, size = 0x2000, scoped, tag = 'input window, operand 0, single buffered']
    #allocation3 [shape = 's32[1]{0}', space=sflag, size = 0x4, scoped, tag = 'scoped memory for tpu_custom_call.1']
    #allocation4 [shape = 's32[1]{0}', space=sflag, size = 0x4, scoped, tag = 'scoped memory for tpu_custom_call.1']
    #allocation5 [shape = 'u8[16384]{0}', space=vmem, size = 0x4000, scoped, tag = 'input window, operand 1, single buffered']
    #allocation6 [shape = 's32[1]{0}', space=sflag, size = 0x4, scoped, tag = 'scoped memory for tpu_custom_call.1']
    #allocation7 [shape = 'u8[8192]{0}', space=vmem, size = 0x2000, scoped, tag = 'output window, operand 0, single buffered']
    %7 = vsyncpa [#allocation3], 0
    %8 = vsyncpa [#allocation6], 0
    %9 = vsyncpa [#allocation4], 0
    // Predicated region
    $region2: #{tpu_custom_call.1} parent=1 // pred_check
      _
    $region3: #{tpu_custom_call.1} parent=1 // pred_check_branch
      %11 = sbr.rel (0) target = $region5
    $region4: #{tpu_custom_call.1} parent=1 // pred_region
      %s13 = ssub.s32 256, 256
      %14 = vsyncadd [#allocation3], %s13
      %s15 = sshll.u32 [#allocation2], 4
      %s16 = int_to_ptr.vmem [resolvable:$true] %s15
      %21 = dma.hbm_to_vmem [thread:$0]  %s0, 256, %s16, [#allocation3], 128, 128, 8
    $region5: #{tpu_custom_call.1} parent=1 // pred_fallthru
      _
    // Predicated region
    $region6: #{tpu_custom_call.1} parent=1 // pred_check
      _
    $region7: #{tpu_custom_call.1} parent=1 // pred_check_branch
      %23 = sbr.rel (0) target = $region9
    $region8: #{tpu_custom_call.1} parent=1 // pred_region
      %s25 = ssub.s32 512, 512
      %26 = vsyncadd [#allocation6], %s25
      %s27 = sshll.u32 [#allocation5], 4
      %s28 = int_to_ptr.vmem [resolvable:$true] %s27
      %33 = dma.hbm_to_vmem [thread:$0]  %s1, 512, %s28, [#allocation6], 128, 128, 8
    $region9: #{tpu_custom_call.1} parent=1 // pred_fallthru
      _
    // Predicated region
    $region10: #{tpu_custom_call.1} parent=1 // pred_check
      _
    $region11: #{tpu_custom_call.1} parent=1 // pred_check_branch
      %35 = sbr.rel (0) target = $region13
    $region12: #{tpu_custom_call.1} parent=1 // pred_region
      %36 = dma.done [#allocation3], 256
    $region13: #{tpu_custom_call.1} parent=1 // pred_fallthru
      _
    // Predicated region
    $region14: #{tpu_custom_call.1} parent=1 // pred_check
      _
    $region15: #{tpu_custom_call.1} parent=1 // pred_check_branch
      %38 = sbr.rel (0) target = $region17
    $region16: #{tpu_custom_call.1} parent=1 // pred_region
      %39 = dma.done [#allocation6], 512
    $region17: #{tpu_custom_call.1} parent=1 // pred_fallthru
      _
    %v41 = vld [vmem:[#allocation2] sm:$0xff]
    %v42 = vld [vmem:[#allocation2 + $0x8] sm:$0xff]
    %v43 = vpack.c.bf16 %v42, %v41
    %v44 = vld [vmem:[#allocation5] sm:$0xff]
    %v45 = vld [vmem:[#allocation5 + $0x8] sm:$0xff]
    %v46 = vld [vmem:[#allocation5 + $0x10] sm:$0xff]
    %v47 = vld [vmem:[#allocation5 + $0x18] sm:$0xff]
    %v48 = vpack.c.bf16 %v45, %v44
    %v49 = vpack.c.bf16 %v47, %v46
    %vm50 = vcmask 261120
    %v52 = vsel %vm50, %v43, 0
    %54 = vmatprep.subr.bf16.mxu0 0
    %55 = vmatpush1.bf16.msra.mxu0 %v48
    %56 = vmatprep.subr.bf16.mxu0 0
    %57 = vmatpush1.bf16.msra.mxu0 %v49
    %58 = vmatprep.subr.bf16.mxu0 0
    %59 = vmatpush1.bf16.msra.mxu0 0
    %60 = vmatprep.subr.bf16.mxu0 0
    %61 = vmatpush1.bf16.msra.mxu0 0
    %62 = vmatprep.subr.bf16.mxu0 0
    %63 = vmatpush1.bf16.msra.mxu0 0
    %64 = vmatprep.subr.bf16.mxu0 0
    %65 = vmatpush1.bf16.msra.mxu0 0
    %66 = vmatprep.subr.bf16.mxu0 0
    %67 = vmatpush1.bf16.msra.mxu0 0
    %68 = vmatprep.subr.bf16.mxu0 0
    %69 = vmatpush1.bf16.msra.mxu0 0
    %70 = vmatprep.subr.bf16.mxu0 0
    %71 = vmatpush1.bf16.msra.mxu0 0
    %72 = vmatprep.subr.bf16.mxu0 0
    %73 = vmatpush1.bf16.msra.mxu0 0
    %74 = vmatprep.subr.bf16.mxu0 0
    %75 = vmatpush1.bf16.msra.mxu0 0
    %76 = vmatprep.subr.bf16.mxu0 0
    %77 = vmatpush1.bf16.msra.mxu0 0
    %78 = vmatprep.subr.bf16.mxu0 0
    %79 = vmatpush1.bf16.msra.mxu0 0
    %80 = vmatprep.subr.bf16.mxu0 0
    %81 = vmatpush1.bf16.msra.mxu0 0
    %82 = vmatprep.subr.bf16.mxu0 0
    %83 = vmatpush1.bf16.msra.mxu0 0
    %84 = vmatprep.subr.bf16.mxu0 0
    %85 = vmatpush1.bf16.msra.mxu0 0
    %86 = vmatprep.mubr.bf16.mxu0 0
    %87 = vmatmul.mubr.bf16.gmra.mrb[0].mxu0 %v52
    %v88 = vpop.f32.mrb[0].mxu0
    %v89 = vadd.f32 0.0, %v88
    %v90 = vpop.f32.mrb[0].mxu0
    %v91 = vpop.f32.mrb[0].mxu0
    %v92 = vadd.f32 0.0, %v91
    %v93 = vpop.f32.mrb[0].mxu0
    %94 = vdwg.mxu0
    %97 = vrot.lane.b32.xlu0 %v89, 112
    %v98 = vpop.permute.xlu0 %97
    %99 = vrot.lane.b32.xlu0 %v92, 112
    %v100 = vpop.permute.xlu0 %99
    %v103 = vpack.c.bf16 %v89, %v89
    %v104 = vpack.c.bf16 %v92, %v92
    %v105 = vpack.c.bf16 %v98, %v98
    %v106 = vpack.c.bf16 %v100, %v100
    %108 = vrot.lane.b32.xlu0 %v103, 96
    %v109 = vpop.permute.xlu0 %108
    %vm110 = vcmask 130048
    %v112 = vsel %vm110, %v103, 0
    %v115 = vsel %vm110, %v109, 0
    %117 = vmatprep.subr.bf16.mxu0 0
    %118 = vmatpush1.bf16.xpose.msra.mxu0 %v115
    %119 = vmatprep.subr.bf16.mxu0 0
    %120 = vmatpush1.bf16.xpose.msra.mxu0 0
    %121 = vmatprep.subr.bf16.mxu0 0
    %122 = vmatpush1.bf16.xpose.msra.mxu0 0
    %123 = vmatprep.subr.bf16.mxu0 0
    %124 = vmatpush1.bf16.xpose.msra.mxu0 0
    %125 = vmatprep.subr.bf16.mxu0 0
    %126 = vmatpush1.bf16.xpose.msra.mxu0 0
    %127 = vmatprep.subr.bf16.mxu0 0
    %128 = vmatpush1.bf16.xpose.msra.mxu0 0
    %129 = vmatprep.subr.bf16.mxu0 0
    %130 = vmatpush1.bf16.xpose.msra.mxu0 0
    %131 = vmatprep.subr.bf16.mxu0 0
    %132 = vmatpush1.bf16.xpose.msra.mxu0 0
    %133 = vmatprep.subr.bf16.mxu0 0
    %134 = vmatpush1.bf16.xpose.msra.mxu0 0
    %135 = vmatprep.subr.bf16.mxu0 0
    %136 = vmatpush1.bf16.xpose.msra.mxu0 0
    %137 = vmatprep.subr.bf16.mxu0 0
    %138 = vmatpush1.bf16.xpose.msra.mxu0 0
    %139 = vmatprep.subr.bf16.mxu0 0
    %140 = vmatpush1.bf16.xpose.msra.mxu0 0
    %141 = vmatprep.subr.bf16.mxu0 0
    %142 = vmatpush1.bf16.xpose.msra.mxu0 0
    %143 = vmatprep.subr.bf16.mxu0 0
    %144 = vmatpush1.bf16.xpose.msra.mxu0 0
    %145 = vmatprep.subr.bf16.mxu0 0
    %146 = vmatpush1.bf16.xpose.msra.mxu0 0
    %147 = vmatprep.subr.bf16.mxu0 0
    %148 = vmatpush1.bf16.xpose.msra.mxu0 0
    %149 = vmatprep.mubr.bf16.mxu0 0
    %150 = vmatmul.mubr.bf16.gmra.mrb[0].mxu0 %v112
    %v151 = vpop.f32.mrb[0].mxu0
    %v152 = vadd.f32 0.0, %v151
    %v153 = vpop.f32.mrb[0].mxu0
    %v154 = vpop.f32.mrb[0].mxu0
    %v155 = vpop.f32.mrb[0].mxu0
    %156 = vdwg.mxu0
    %158 = vrot.lane.b32.xlu0 %v104, 96
    %v159 = vpop.permute.xlu0 %158
    %v161 = vsel %vm110, %v104, 0
    %v164 = vsel %vm110, %v159, 0
    %166 = vmatprep.subr.bf16.mxu0 0
    %167 = vmatpush1.bf16.xpose.msra.mxu0 %v164
    %168 = vmatprep.subr.bf16.mxu0 0
    %169 = vmatpush1.bf16.xpose.msra.mxu0 0
    %170 = vmatprep.subr.bf16.mxu0 0
    %171 = vmatpush1.bf16.xpose.msra.mxu0 0
    %172 = vmatprep.subr.bf16.mxu0 0
    %173 = vmatpush1.bf16.xpose.msra.mxu0 0
    %174 = vmatprep.subr.bf16.mxu0 0
    %175 = vmatpush1.bf16.xpose.msra.mxu0 0
    %176 = vmatprep.subr.bf16.mxu0 0
    %177 = vmatpush1.bf16.xpose.msra.mxu0 0
    %178 = vmatprep.subr.bf16.mxu0 0
    %179 = vmatpush1.bf16.xpose.msra.mxu0 0
    %180 = vmatprep.subr.bf16.mxu0 0
    %181 = vmatpush1.bf16.xpose.msra.mxu0 0
    %182 = vmatprep.subr.bf16.mxu0 0
    %183 = vmatpush1.bf16.xpose.msra.mxu0 0
    %184 = vmatprep.subr.bf16.mxu0 0
    %185 = vmatpush1.bf16.xpose.msra.mxu0 0
    %186 = vmatprep.subr.bf16.mxu0 0
    %187 = vmatpush1.bf16.xpose.msra.mxu0 0
    %188 = vmatprep.subr.bf16.mxu0 0
    %189 = vmatpush1.bf16.xpose.msra.mxu0 0
    %190 = vmatprep.subr.bf16.mxu0 0
    %191 = vmatpush1.bf16.xpose.msra.mxu0 0
    %192 = vmatprep.subr.bf16.mxu0 0
    %193 = vmatpush1.bf16.xpose.msra.mxu0 0
    %194 = vmatprep.subr.bf16.mxu0 0
    %195 = vmatpush1.bf16.xpose.msra.mxu0 0
    %196 = vmatprep.subr.bf16.mxu0 0
    %197 = vmatpush1.bf16.xpose.msra.mxu0 0
    %198 = vmatprep.mubr.bf16.mxu0 0
    %199 = vmatmul.mubr.bf16.gmra.mrb[0].mxu0 %v161
    %v200 = vpop.f32.mrb[0].mxu0
    %v201 = vadd.f32 0.0, %v200
    %v202 = vpop.f32.mrb[0].mxu0
    %v203 = vpop.f32.mrb[0].mxu0
    %v204 = vpop.f32.mrb[0].mxu0
    %205 = vdwg.mxu0
    %207 = vrot.lane.b32.xlu0 %v105, 96
    %v208 = vpop.permute.xlu0 %207
    %v210 = vsel %vm110, %v105, 0
    %v213 = vsel %vm110, %v208, 0
    %215 = vmatprep.subr.bf16.mxu0 0
    %216 = vmatpush1.bf16.xpose.msra.mxu0 %v213
    %217 = vmatprep.subr.bf16.mxu0 0
    %218 = vmatpush1.bf16.xpose.msra.mxu0 0
    %219 = vmatprep.subr.bf16.mxu0 0
    %220 = vmatpush1.bf16.xpose.msra.mxu0 0
    %221 = vmatprep.subr.bf16.mxu0 0
    %222 = vmatpush1.bf16.xpose.msra.mxu0 0
    %223 = vmatprep.subr.bf16.mxu0 0
    %224 = vmatpush1.bf16.xpose.msra.mxu0 0
    %225 = vmatprep.subr.bf16.mxu0 0
    %226 = vmatpush1.bf16.xpose.msra.mxu0 0
    %227 = vmatprep.subr.bf16.mxu0 0
    %228 = vmatpush1.bf16.xpose.msra.mxu0 0
    %229 = vmatprep.subr.bf16.mxu0 0
    %230 = vmatpush1.bf16.xpose.msra.mxu0 0
    %231 = vmatprep.subr.bf16.mxu0 0
    %232 = vmatpush1.bf16.xpose.msra.mxu0 0
    %233 = vmatprep.subr.bf16.mxu0 0
    %234 = vmatpush1.bf16.xpose.msra.mxu0 0
    %235 = vmatprep.subr.bf16.mxu0 0
    %236 = vmatpush1.bf16.xpose.msra.mxu0 0
    %237 = vmatprep.subr.bf16.mxu0 0
    %238 = vmatpush1.bf16.xpose.msra.mxu0 0
    %239 = vmatprep.subr.bf16.mxu0 0
    %240 = vmatpush1.bf16.xpose.msra.mxu0 0
    %241 = vmatprep.subr.bf16.mxu0 0
    %242 = vmatpush1.bf16.xpose.msra.mxu0 0
    %243 = vmatprep.subr.bf16.mxu0 0
    %244 = vmatpush1.bf16.xpose.msra.mxu0 0
    %245 = vmatprep.subr.bf16.mxu0 0
    %246 = vmatpush1.bf16.xpose.msra.mxu0 0
    %247 = vmatprep.mubr.bf16.mxu0 0
    %248 = vmatmul.mubr.bf16.gmra.mrb[0].mxu0 %v210
    %v249 = vpop.f32.mrb[0].mxu0
    %v250 = vadd.f32 0.0, %v249
    %v251 = vpop.f32.mrb[0].mxu0
    %v252 = vpop.f32.mrb[0].mxu0
    %v253 = vpop.f32.mrb[0].mxu0
    %254 = vdwg.mxu0
    %256 = vrot.lane.b32.xlu0 %v106, 96
    %v257 = vpop.permute.xlu0 %256
    %v259 = vsel %vm110, %v106, 0
    %v262 = vsel %vm110, %v257, 0
    %264 = vmatprep.subr.bf16.mxu0 0
    %265 = vmatpush1.bf16.xpose.msra.mxu0 %v262
    %266 = vmatprep.subr.bf16.mxu0 0
    %267 = vmatpush1.bf16.xpose.msra.mxu0 0
    %268 = vmatprep.subr.bf16.mxu0 0
    %269 = vmatpush1.bf16.xpose.msra.mxu0 0
    %270 = vmatprep.subr.bf16.mxu0 0
    %271 = vmatpush1.bf16.xpose.msra.mxu0 0
    %272 = vmatprep.subr.bf16.mxu0 0
    %273 = vmatpush1.bf16.xpose.msra.mxu0 0
    %274 = vmatprep.subr.bf16.mxu0 0
    %275 = vmatpush1.bf16.xpose.msra.mxu0 0
    %276 = vmatprep.subr.bf16.mxu0 0
    %277 = vmatpush1.bf16.xpose.msra.mxu0 0
    %278 = vmatprep.subr.bf16.mxu0 0
    %279 = vmatpush1.bf16.xpose.msra.mxu0 0
    %280 = vmatprep.subr.bf16.mxu0 0
    %281 = vmatpush1.bf16.xpose.msra.mxu0 0
    %282 = vmatprep.subr.bf16.mxu0 0
    %283 = vmatpush1.bf16.xpose.msra.mxu0 0
    %284 = vmatprep.subr.bf16.mxu0 0
    %285 = vmatpush1.bf16.xpose.msra.mxu0 0
    %286 = vmatprep.subr.bf16.mxu0 0
    %287 = vmatpush1.bf16.xpose.msra.mxu0 0
    %288 = vmatprep.subr.bf16.mxu0 0
    %289 = vmatpush1.bf16.xpose.msra.mxu0 0
    %290 = vmatprep.subr.bf16.mxu0 0
    %291 = vmatpush1.bf16.xpose.msra.mxu0 0
    %292 = vmatprep.subr.bf16.mxu0 0
    %293 = vmatpush1.bf16.xpose.msra.mxu0 0
    %294 = vmatprep.subr.bf16.mxu0 0
    %295 = vmatpush1.bf16.xpose.msra.mxu0 0
    %296 = vmatprep.mubr.bf16.mxu0 0
    %297 = vmatmul.mubr.bf16.gmra.mrb[0].mxu0 %v259
    %v298 = vpop.f32.mrb[0].mxu0
    %v299 = vadd.f32 0.0, %v298
    %v300 = vpop.f32.mrb[0].mxu0
    %v301 = vpop.f32.mrb[0].mxu0
    %v302 = vpop.f32.mrb[0].mxu0
    %303 = vdwg.mxu0
    %vm304 = vcmask 64512
    %v305 = vsel %vm304, %v152, -inf
    %306 = vmax.xlane.f32.xlu0 %v305
    %v307 = vpop.xlane.xlu0 %306
    %v308 = vsel %vm304, %v201, -inf
    %309 = vmax.xlane.f32.xlu0 %v308
    %v310 = vpop.xlane.xlu0 %309
    %v311 = vsel %vm304, %v250, -inf
    %312 = vmax.xlane.f32.xlu0 %v311
    %v313 = vpop.xlane.xlu0 %312
    %v314 = vsel %vm304, %v299, -inf
    %315 = vmax.xlane.f32.xlu0 %v314
    %v316 = vpop.xlane.xlu0 %315
    %v317 = vsub.f32 %v152, %v307
    %v318 = vsub.f32 %v201, %v310
    %v319 = vsub.f32 %v250, %v313
    %v320 = vsub.f32 %v299, %v316
    %v321 = vmul.f32 %v317, 1.442695
    %v322 = vpow.pop %v321
    %v323 = vmul.f32 %v318, 1.442695
    %v324 = vpow.pop %v323
    %v325 = vmul.f32 %v319, 1.442695
    %v326 = vpow.pop %v325
    %v327 = vmul.f32 %v320, 1.442695
    %v328 = vpow.pop %v327
    %v329 = vsel %vm304, %v322, 0.0
    %330 = vadd.xlane.f32.xlu0 %v329
    %v331 = vpop.xlane.xlu0 %330
    %v332 = vsel %vm304, %v324, 0.0
    %333 = vadd.xlane.f32.xlu0 %v332
    %v334 = vpop.xlane.xlu0 %333
    %v335 = vsel %vm304, %v326, 0.0
    %336 = vadd.xlane.f32.xlu0 %v335
    %v337 = vpop.xlane.xlu0 %336
    %v338 = vsel %vm304, %v328, 0.0
    %339 = vadd.xlane.f32.xlu0 %v338
    %v340 = vpop.xlane.xlu0 %339
    %v341 = vrcp.pop %v331
    %v342 = vmul.f32 %v322, %v341
    %v343 = vrcp.pop %v334
    %v344 = vmul.f32 %v324, %v343
    %v345 = vrcp.pop %v337
    %v346 = vmul.f32 %v326, %v345
    %v347 = vrcp.pop %v340
    %v348 = vmul.f32 %v328, %v347
    %v349 = vpack.c.bf16 %v342, %v342
    %v350 = vpack.c.bf16 %v344, %v344
    %v351 = vpack.c.bf16 %v346, %v346
    %v352 = vpack.c.bf16 %v348, %v348
    %353 = vrot.lane.b32.xlu0 %v103, 64
    %v354 = vpop.permute.xlu0 %353
    %v356 = vsel %vm304, %v349, 0
    %vm358 = vcmask 1043456
    %v360 = vsel %vm358, %v354, 0
    %362 = vmatprep.subr.bf16.mxu0 0
    %363 = vmatpush1.bf16.msra.mxu0 %v360
    %364 = vmatprep.subr.bf16.mxu0 0
    %365 = vmatpush1.bf16.msra.mxu0 0
    %366 = vmatprep.subr.bf16.mxu0 0
    %367 = vmatpush1.bf16.msra.mxu0 0
    %368 = vmatprep.subr.bf16.mxu0 0
    %369 = vmatpush1.bf16.msra.mxu0 0
    %370 = vmatprep.subr.bf16.mxu0 0
    %371 = vmatpush1.bf16.msra.mxu0 0
    %372 = vmatprep.subr.bf16.mxu0 0
    %373 = vmatpush1.bf16.msra.mxu0 0
    %374 = vmatprep.subr.bf16.mxu0 0
    %375 = vmatpush1.bf16.msra.mxu0 0
    %376 = vmatprep.subr.bf16.mxu0 0
    %377 = vmatpush1.bf16.msra.mxu0 0
    %378 = vmatprep.subr.bf16.mxu0 0
    %379 = vmatpush1.bf16.msra.mxu0 0
    %380 = vmatprep.subr.bf16.mxu0 0
    %381 = vmatpush1.bf16.msra.mxu0 0
    %382 = vmatprep.subr.bf16.mxu0 0
    %383 = vmatpush1.bf16.msra.mxu0 0
    %384 = vmatprep.subr.bf16.mxu0 0
    %385 = vmatpush1.bf16.msra.mxu0 0
    %386 = vmatprep.subr.bf16.mxu0 0
    %387 = vmatpush1.bf16.msra.mxu0 0
    %388 = vmatprep.subr.bf16.mxu0 0
    %389 = vmatpush1.bf16.msra.mxu0 0
    %390 = vmatprep.subr.bf16.mxu0 0
    %391 = vmatpush1.bf16.msra.mxu0 0
    %392 = vmatprep.subr.bf16.mxu0 0
    %393 = vmatpush1.bf16.msra.mxu0 0
    %394 = vmatprep.mubr.bf16.mxu0 0
    %395 = vmatmul.mubr.bf16.gmra.mrb[0].mxu0 %v356
    %v396 = vpop.f32.mrb[0].mxu0
    %v397 = vadd.f32 0.0, %v396
    %v398 = vpop.f32.mrb[0].mxu0
    %v399 = vpop.f32.mrb[0].mxu0
    %v400 = vpop.f32.mrb[0].mxu0
    %401 = vdwg.mxu0
    %402 = vrot.lane.b32.xlu0 %v104, 64
    %v403 = vpop.permute.xlu0 %402
    %v405 = vsel %vm304, %v350, 0
    %v408 = vsel %vm358, %v403, 0
    %410 = vmatprep.subr.bf16.mxu0 0
    %411 = vmatpush1.bf16.msra.mxu0 %v408
    %412 = vmatprep.subr.bf16.mxu0 0
    %413 = vmatpush1.bf16.msra.mxu0 0
    %414 = vmatprep.subr.bf16.mxu0 0
    %415 = vmatpush1.bf16.msra.mxu0 0
    %416 = vmatprep.subr.bf16.mxu0 0
    %417 = vmatpush1.bf16.msra.mxu0 0
    %418 = vmatprep.subr.bf16.mxu0 0
    %419 = vmatpush1.bf16.msra.mxu0 0
    %420 = vmatprep.subr.bf16.mxu0 0
    %421 = vmatpush1.bf16.msra.mxu0 0
    %422 = vmatprep.subr.bf16.mxu0 0
    %423 = vmatpush1.bf16.msra.mxu0 0
    %424 = vmatprep.subr.bf16.mxu0 0
    %425 = vmatpush1.bf16.msra.mxu0 0
    %426 = vmatprep.subr.bf16.mxu0 0
    %427 = vmatpush1.bf16.msra.mxu0 0
    %428 = vmatprep.subr.bf16.mxu0 0
    %429 = vmatpush1.bf16.msra.mxu0 0
    %430 = vmatprep.subr.bf16.mxu0 0
    %431 = vmatpush1.bf16.msra.mxu0 0
    %432 = vmatprep.subr.bf16.mxu0 0
    %433 = vmatpush1.bf16.msra.mxu0 0
    %434 = vmatprep.subr.bf16.mxu0 0
    %435 = vmatpush1.bf16.msra.mxu0 0
    %436 = vmatprep.subr.bf16.mxu0 0
    %437 = vmatpush1.bf16.msra.mxu0 0
    %438 = vmatprep.subr.bf16.mxu0 0
    %439 = vmatpush1.bf16.msra.mxu0 0
    %440 = vmatprep.subr.bf16.mxu0 0
    %441 = vmatpush1.bf16.msra.mxu0 0
    %442 = vmatprep.mubr.bf16.mxu0 0
    %443 = vmatmul.mubr.bf16.gmra.mrb[0].mxu0 %v405
    %v444 = vpop.f32.mrb[0].mxu0
    %v445 = vadd.f32 0.0, %v444
    %v446 = vpop.f32.mrb[0].mxu0
    %v447 = vpop.f32.mrb[0].mxu0
    %v448 = vpop.f32.mrb[0].mxu0
    %449 = vdwg.mxu0
    %450 = vrot.lane.b32.xlu0 %v105, 64
    %v451 = vpop.permute.xlu0 %450
    %v453 = vsel %vm304, %v351, 0
    %v456 = vsel %vm358, %v451, 0
    %458 = vmatprep.subr.bf16.mxu0 0
    %459 = vmatpush1.bf16.msra.mxu0 %v456
    %460 = vmatprep.subr.bf16.mxu0 0
    %461 = vmatpush1.bf16.msra.mxu0 0
    %462 = vmatprep.subr.bf16.mxu0 0
    %463 = vmatpush1.bf16.msra.mxu0 0
    %464 = vmatprep.subr.bf16.mxu0 0
    %465 = vmatpush1.bf16.msra.mxu0 0
    %466 = vmatprep.subr.bf16.mxu0 0
    %467 = vmatpush1.bf16.msra.mxu0 0
    %468 = vmatprep.subr.bf16.mxu0 0
    %469 = vmatpush1.bf16.msra.mxu0 0
    %470 = vmatprep.subr.bf16.mxu0 0
    %471 = vmatpush1.bf16.msra.mxu0 0
    %472 = vmatprep.subr.bf16.mxu0 0
    %473 = vmatpush1.bf16.msra.mxu0 0
    %474 = vmatprep.subr.bf16.mxu0 0
    %475 = vmatpush1.bf16.msra.mxu0 0
    %476 = vmatprep.subr.bf16.mxu0 0
    %477 = vmatpush1.bf16.msra.mxu0 0
    %478 = vmatprep.subr.bf16.mxu0 0
    %479 = vmatpush1.bf16.msra.mxu0 0
    %480 = vmatprep.subr.bf16.mxu0 0
    %481 = vmatpush1.bf16.msra.mxu0 0
    %482 = vmatprep.subr.bf16.mxu0 0
    %483 = vmatpush1.bf16.msra.mxu0 0
    %484 = vmatprep.subr.bf16.mxu0 0
    %485 = vmatpush1.bf16.msra.mxu0 0
    %486 = vmatprep.subr.bf16.mxu0 0
    %487 = vmatpush1.bf16.msra.mxu0 0
    %488 = vmatprep.subr.bf16.mxu0 0
    %489 = vmatpush1.bf16.msra.mxu0 0
    %490 = vmatprep.mubr.bf16.mxu0 0
    %491 = vmatmul.mubr.bf16.gmra.mrb[0].mxu0 %v453
    %v492 = vpop.f32.mrb[0].mxu0
    %v493 = vadd.f32 0.0, %v492
    %v494 = vpop.f32.mrb[0].mxu0
    %v495 = vpop.f32.mrb[0].mxu0
    %v496 = vpop.f32.mrb[0].mxu0
    %497 = vdwg.mxu0
    %498 = vrot.lane.b32.xlu0 %v106, 64
    %v499 = vpop.permute.xlu0 %498
    %v501 = vsel %vm304, %v352, 0
    %v504 = vsel %vm358, %v499, 0
    %506 = vmatprep.subr.bf16.mxu0 0
    %507 = vmatpush1.bf16.msra.mxu0 %v504
    %508 = vmatprep.subr.bf16.mxu0 0
    %509 = vmatpush1.bf16.msra.mxu0 0
    %510 = vmatprep.subr.bf16.mxu0 0
    %511 = vmatpush1.bf16.msra.mxu0 0
    %512 = vmatprep.subr.bf16.mxu0 0
    %513 = vmatpush1.bf16.msra.mxu0 0
    %514 = vmatprep.subr.bf16.mxu0 0
    %515 = vmatpush1.bf16.msra.mxu0 0
    %516 = vmatprep.subr.bf16.mxu0 0
    %517 = vmatpush1.bf16.msra.mxu0 0
    %518 = vmatprep.subr.bf16.mxu0 0
    %519 = vmatpush1.bf16.msra.mxu0 0
    %520 = vmatprep.subr.bf16.mxu0 0
    %521 = vmatpush1.bf16.msra.mxu0 0
    %522 = vmatprep.subr.bf16.mxu0 0
    %523 = vmatpush1.bf16.msra.mxu0 0
    %524 = vmatprep.subr.bf16.mxu0 0
    %525 = vmatpush1.bf16.msra.mxu0 0
    %526 = vmatprep.subr.bf16.mxu0 0
    %527 = vmatpush1.bf16.msra.mxu0 0
    %528 = vmatprep.subr.bf16.mxu0 0
    %529 = vmatpush1.bf16.msra.mxu0 0
    %530 = vmatprep.subr.bf16.mxu0 0
    %531 = vmatpush1.bf16.msra.mxu0 0
    %532 = vmatprep.subr.bf16.mxu0 0
    %533 = vmatpush1.bf16.msra.mxu0 0
    %534 = vmatprep.subr.bf16.mxu0 0
    %535 = vmatpush1.bf16.msra.mxu0 0
    %536 = vmatprep.subr.bf16.mxu0 0
    %537 = vmatpush1.bf16.msra.mxu0 0
    %538 = vmatprep.mubr.bf16.mxu0 0
    %539 = vmatmul.mubr.bf16.gmra.mrb[0].mxu0 %v501
    %v540 = vpop.f32.mrb[0].mxu0
    %v541 = vadd.f32 0.0, %v540
    %v542 = vpop.f32.mrb[0].mxu0
    %v543 = vpop.f32.mrb[0].mxu0
    %v544 = vpop.f32.mrb[0].mxu0
    %545 = vdwg.mxu0
    %548 = vrot.lane.b32.xlu0 %v493, 16
    %v549 = vpop.permute.xlu0 %548
    %550 = vrot.lane.b32.xlu0 %v541, 16
    %v551 = vpop.permute.xlu0 %550
    %v554 = vsel %vm110, %v397, %v549
    %v555 = vsel %vm110, %v445, %v551
    %556 = vst.msk [vmem:[#allocation7] sm:$0xff] %vm50, %v554
    %557 = vst.msk [vmem:[#allocation7 + $0x8] sm:$0xff] %vm50, %v555
    // Predicated region
    $region18: #{tpu_custom_call.1} parent=1 // pred_check
      _
    $region19: #{tpu_custom_call.1} parent=1 // pred_check_branch
      %559 = sbr.rel (0) target = $region21
    $region20: #{tpu_custom_call.1} parent=1 // pred_region
      %s561 = ssub.s32 256, 256
      %562 = vsyncadd [#allocation4], %s561
      %s563 = sshll.u32 [#allocation7], 4
      %s564 = int_to_ptr.vmem [resolvable:$true] %s563
      %569 = dma.vmem_to_hbm [thread:$0]  %s564, 256, %s2, [#allocation4], 128, 128, 8
    $region21: #{tpu_custom_call.1} parent=1 // pred_fallthru
      _
    // Predicated region
    $region22: #{tpu_custom_call.1} parent=1 // pred_check
      _
    $region23: #{tpu_custom_call.1} parent=1 // pred_check_branch
      %571 = sbr.rel (0) target = $region25
    $region24: #{tpu_custom_call.1} parent=1 // pred_region
      %572 = dma.done [#allocation4], 256
    $region25: #{tpu_custom_call.1} parent=1 // pred_fallthru
      _
    %573 = vsyncpa [#allocation3], 1
    %574 = vsyncpa [#allocation6], 1
    %575 = vsyncpa [#allocation4], 1

</llo_original>
